<compile_context>
chip_gen: v7x
topology: tpu7x:2x2x1
jax: 0.10.0
libtpu: 0.0.40
codegen_flags: <defaults>
</compile_context>

<pallas_src>
import math

import jax
import jax.numpy as jnp
from jax.experimental import pallas as pl
from jax.experimental.pallas import tpu as pltpu

BN_EPS = 1e-5
LANE = 128


def decoder_kernel(x_ref, w1_ref, g_ref, beta_ref, w2_ref, b2_ref, o_ref):
    # fc1 on the MXU: bf16 operands (cast here, x arrives unpadded f32),
    # f32 accumulation.  No fc1 bias: it cancels under train-mode BN.
    h = jnp.dot(x_ref[...].astype(jnp.bfloat16), w1_ref[...],
                preferred_element_type=jnp.float32)

    # BatchNorm1d (training mode), one-pass batch statistics.
    inv_b = 1.0 / h.shape[0]                          # static Python float
    s1 = jnp.sum(h, axis=0, keepdims=True)
    s2 = jnp.sum(h * h, axis=0, keepdims=True)
    mean = s1 * inv_b
    var = jnp.maximum(s2 * inv_b - mean * mean, 0.0)  # guard cancellation
    scale = jax.lax.rsqrt(var + BN_EPS) * g_ref[...]

    # Fused BN-affine + sigmoid prescale:
    #   sigmoid(hn) = 0.5*tanh(0.5*hn) + 0.5,  hn = (h - mean)*scale + beta
    #   0.5*hn = h*a + c  with  a = 0.5*scale, c = 0.5*(beta - mean*scale)
    # The trailing 0.5*t + 0.5 is folded offline into W2'/b2'.
    a = 0.5 * scale
    c = 0.5 * (beta_ref[...] - mean * scale)
    t = jnp.tanh(h * a + c)                           # EUP slot

    # fc2 on the MXU with the pre-folded W2' = 0.5*W2, b2' = b2 + 0.5*rowsum(W2).
    out = jnp.dot(t.astype(jnp.bfloat16), w2_ref[...],
                  preferred_element_type=jnp.float32) + b2_ref[...]
    o_ref[...] = out.astype(o_ref.dtype)


def _round_up(n, m):
    return ((n + m - 1) // m) * m


def prepare_params(w1, b1, gamma, beta, w2, b2):
    """One-time (offline) parameter prep: pad to 128 lanes, cast MXU operands
    to bf16, drop the cancelled fc1 bias, fold the sigmoid's 0.5*t + 0.5 into
    fc2's weights/bias.  NOT part of the per-call hot path."""
    del b1  # cancels exactly under training-mode BatchNorm
    E, H = w1.shape
    O = w2.shape[0]
    Ep = _round_up(E, LANE)
    Op = _round_up(O, LANE)
    bf16 = jnp.bfloat16

    w1t_p = jnp.zeros((H, Ep), bf16).at[:, :E].set(w1.T.astype(bf16))
    g_p = jnp.zeros((1, Ep), jnp.float32).at[:, :E].set(gamma.reshape(1, -1))
    be_p = jnp.zeros((1, Ep), jnp.float32).at[:, :E].set(beta.reshape(1, -1))

    w2_fold = 0.5 * w2                                   # W2' = 0.5*W2
    b2_fold = b2 + 0.5 * jnp.sum(w2, axis=1)             # b2' = b2 + 0.5*rowsum
    w2t_p = jnp.zeros((Ep, Op), bf16).at[:E, :O].set(w2_fold.T.astype(bf16))
    b2_p = jnp.zeros((1, Op), jnp.float32).at[:, :O].set(b2_fold.reshape(1, -1))

    return w1t_p, g_p, be_p, w2t_p, b2_p


def decoder_forward(x, w1t_p, g_p, be_p, w2t_p, b2_p):
    """x: (B, H) f32, unpadded.  Params are the pre-padded/pre-cast outputs of
    `prepare_params`.  Returns the lane-dense padded (B, Op) slab; the final
    consumer slices [:, :O]."""
    B, H = x.shape
    Ep = w1t_p.shape[1]
    Op = w2t_p.shape[1]

    full = lambda shape: pl.BlockSpec(shape, lambda: (0,) * len(shape))

    flops = 2 * B * (H * Ep + Ep * Op)
    bytes_accessed = (x.size * 4 + w1t_p.size * 2 + w2t_p.size * 2
                      + (g_p.size + be_p.size + b2_p.size) * 4
                      + B * Op * 4)

    return pl.pallas_call(
        decoder_kernel,
        out_shape=jax.ShapeDtypeStruct((B, Op), jnp.float32),
        grid=(),
        in_specs=[
            full((B, H)),      # x (unpadded; block == full array dims)
            full((H, Ep)),     # W1^T (contraction over real H)
            full((1, Ep)),     # gamma
            full((1, Ep)),     # beta
            full((Ep, Op)),    # W2'^T (pre-folded)
            full((1, Op)),     # b2'
        ],
        out_specs=full((B, Op)),
        cost_estimate=pl.CostEstimate(flops=flops,
                                      transcendentals=B * Ep,
                                      bytes_accessed=bytes_accessed),
        compiler_params=pltpu.CompilerParams(
            vmem_limit_bytes=4 * 1024 * 1024),   # right-sized (~100 KB footprint)
    )(x, w1t_p, g_p, be_p, w2t_p, b2_p)


def init_params(key, hidden_layer_size, encoder_layer_size, output_size):
    """Deterministic init mirroring the PyTorch module's __init__ shapes."""
    k1, k2, k3, k4 = jax.random.split(key, 4)

    # decoderfc1: Linear(hidden -> encoder), kaiming_normal_ fan_in
    std1 = math.sqrt(2.0 / hidden_layer_size)
    w1 = jax.random.normal(k1, (encoder_layer_size, hidden_layer_size),
                           jnp.float32) * std1
    bound1 = 1.0 / math.sqrt(hidden_layer_size)
    b1 = jax.random.uniform(k2, (encoder_layer_size,), jnp.float32,
                            -bound1, bound1)

    # bn1: BatchNorm1d(encoder) default affine init
    gamma = jnp.ones((encoder_layer_size,), jnp.float32)
    beta = jnp.zeros((encoder_layer_size,), jnp.float32)

    # decoderfc2: Linear(encoder -> output), kaiming_normal_ fan_in
    std2 = math.sqrt(2.0 / encoder_layer_size)
    w2 = jax.random.normal(k3, (output_size, encoder_layer_size),
                           jnp.float32) * std2
    bound2 = 1.0 / math.sqrt(encoder_layer_size)
    b2 = jax.random.uniform(k4, (output_size,), jnp.float32, -bound2, bound2)

    return w1, b1, gamma, beta, w2, b2


def reference_forward_f32(x, w1, b1, gamma, beta, w2, b2):
    """Pure-f32 PyTorch-semantics reference (includes the b1 that cancels)."""
    h = x @ w1.T + b1
    mean = jnp.mean(h, axis=0, keepdims=True)
    var = jnp.mean((h - mean) ** 2, axis=0, keepdims=True)
    hn = (h - mean) / jnp.sqrt(var + BN_EPS) * gamma + beta
    s = jax.nn.sigmoid(hn)
    return s @ w2.T + b2


def reference_forward_matched(x, w1, gamma, beta, w2, b2):
    """Reference mirroring the kernel's exact math (bf16 MXU operands, f32
    accumulation, no b1, fused tanh/sigmoid fold)."""
    bf16 = jnp.bfloat16
    h = jnp.dot(x.astype(bf16), w1.T.astype(bf16),
                preferred_element_type=jnp.float32)
    mean = jnp.mean(h, axis=0, keepdims=True)
    var = jnp.maximum(jnp.mean(h * h, axis=0, keepdims=True) - mean * mean, 0.0)
    scale = jax.lax.rsqrt(var + BN_EPS) * gamma
    a = 0.5 * scale
    c = 0.5 * (beta - mean * scale)
    t = jnp.tanh(h * a + c)
    w2_fold = 0.5 * w2
    b2_fold = b2 + 0.5 * jnp.sum(w2, axis=1)
    return jnp.dot(t.astype(bf16), w2_fold.T.astype(bf16),
                   preferred_element_type=jnp.float32) + b2_fold


if __name__ == "__main__":
    batch = 8
    hidden_layer_size = 32
    encoder_layer_size = 64
    output_size = 16

    key = jax.random.PRNGKey(0)
    k_x, k_p = jax.random.split(key)

    x = jax.random.normal(k_x, (batch, hidden_layer_size), jnp.float32)
    w1, b1, gamma, beta, w2, b2 = init_params(
        k_p, hidden_layer_size, encoder_layer_size, output_size)

    # One-time parameter prep (outside the per-call hot path).
    params_p = prepare_params(w1, b1, gamma, beta, w2, b2)
    params_p = jax.block_until_ready(params_p)

    # Per-call hot path: just the pallas_call on unpadded x.
    out_p = decoder_forward(x, *params_p)
    out_p = jax.block_until_ready(out_p)

    # Final consumer slices the lane-dense padded slab back to the true O.
    out = out_p[:, :output_size]
    assert out.shape == (batch, output_size)

    # Tight check against a precision-matched reference (kernel math).
    ref_m = reference_forward_matched(x, w1, gamma, beta, w2, b2)
    assert jnp.allclose(out, ref_m, atol=1e-3, rtol=1e-3)

    # Loose check against the pure-f32 PyTorch-semantics reference
    # (bounds the bf16-MXU approximation error; b1's cancellation is implicit).
    ref_f32 = reference_forward_f32(x, w1, b1, gamma, beta, w2, b2)
    assert jnp.allclose(out, ref_f32, atol=5e-2, rtol=5e-2)

    print("KERNEL_OK")
</pallas_src>

<mosaic_0001>
module attributes {stable_mosaic.version = 11 : i64} {
  func.func @decoder_kernel(%arg0: memref<8x32xf32, #tpu.memory_space<vmem>>, %arg1: memref<32x128xbf16, #tpu.memory_space<vmem>>, %arg2: memref<1x128xf32, #tpu.memory_space<vmem>>, %arg3: memref<1x128xf32, #tpu.memory_space<vmem>>, %arg4: memref<128x128xbf16, #tpu.memory_space<vmem>>, %arg5: memref<1x128xf32, #tpu.memory_space<vmem>>, %arg6: memref<8x128xf32, #tpu.memory_space<vmem>>) attributes {dimension_semantics = [], scalar_prefetch = 0 : i64, scratch_operands = 0 : i64, tpu.core_type = #tpu.core_type<tc>} {
    %c0 = arith.constant 0 : index
    %c0_0 = arith.constant 0 : index
    %0 = vector.load %arg0[%c0, %c0_0] : memref<8x32xf32, #tpu.memory_space<vmem>>, vector<8x32xf32>
    %1 = arith.truncf %0 : vector<8x32xf32> to vector<8x32xbf16>
    %c0_1 = arith.constant 0 : index
    %c0_2 = arith.constant 0 : index
    %2 = vector.load %arg1[%c0_1, %c0_2] : memref<32x128xbf16, #tpu.memory_space<vmem>>, vector<32x128xbf16>
    %cst = arith.constant dense<0.000000e+00> : vector<8x128xf32>
    %3 = tpu.matmul %1, %2, %cst {dimension_numbers = #tpu.dot_dimension_numbers<[1], [0], [0], [1], [0, 0, 1, 1], [], []>} : vector<8x32xbf16>, vector<32x128xbf16>, vector<8x128xf32> -> vector<8x128xf32>
    %cst_3 = arith.constant dense<0.000000e+00> : vector<128xf32>
    %4 = vector.multi_reduction <add>, %3, %cst_3 [0] : vector<8x128xf32> to vector<128xf32>
    %5 = vector.shape_cast %4 : vector<128xf32> to vector<1x128xf32>
    %6 = arith.mulf %3, %3 : vector<8x128xf32>
    %cst_4 = arith.constant dense<0.000000e+00> : vector<128xf32>
    %7 = vector.multi_reduction <add>, %6, %cst_4 [0] : vector<8x128xf32> to vector<128xf32>
    %8 = vector.shape_cast %7 : vector<128xf32> to vector<1x128xf32>
    %cst_5 = arith.constant 1.250000e-01 : f32
    %9 = vector.broadcast %cst_5 : f32 to vector<1x128xf32>
    %10 = arith.mulf %5, %9 : vector<1x128xf32>
    %cst_6 = arith.constant 1.250000e-01 : f32
    %11 = vector.broadcast %cst_6 : f32 to vector<1x128xf32>
    %12 = arith.mulf %8, %11 : vector<1x128xf32>
    %13 = arith.mulf %10, %10 : vector<1x128xf32>
    %14 = arith.subf %12, %13 : vector<1x128xf32>
    %cst_7 = arith.constant 0.000000e+00 : f32
    %15 = vector.broadcast %cst_7 : f32 to vector<1x128xf32>
    %16 = arith.maximumf %14, %15 : vector<1x128xf32>
    %cst_8 = arith.constant 9.99999974E-6 : f32
    %17 = vector.broadcast %cst_8 : f32 to vector<1x128xf32>
    %18 = arith.addf %16, %17 : vector<1x128xf32>
    %19 = math.rsqrt %18 : vector<1x128xf32>
    %c0_9 = arith.constant 0 : index
    %c0_10 = arith.constant 0 : index
    %20 = vector.load %arg2[%c0_9, %c0_10] : memref<1x128xf32, #tpu.memory_space<vmem>>, vector<1x128xf32>
    %21 = arith.mulf %19, %20 : vector<1x128xf32>
    %cst_11 = arith.constant 5.000000e-01 : f32
    %22 = vector.broadcast %cst_11 : f32 to vector<1x128xf32>
    %23 = arith.mulf %22, %21 : vector<1x128xf32>
    %c0_12 = arith.constant 0 : index
    %c0_13 = arith.constant 0 : index
    %24 = vector.load %arg3[%c0_12, %c0_13] : memref<1x128xf32, #tpu.memory_space<vmem>>, vector<1x128xf32>
    %25 = arith.mulf %10, %21 : vector<1x128xf32>
    %26 = arith.subf %24, %25 : vector<1x128xf32>
    %cst_14 = arith.constant 5.000000e-01 : f32
    %27 = vector.broadcast %cst_14 : f32 to vector<1x128xf32>
    %28 = arith.mulf %27, %26 : vector<1x128xf32>
    %29 = vector.broadcast %23 : vector<1x128xf32> to vector<8x128xf32>
    %30 = arith.mulf %3, %29 : vector<8x128xf32>
    %31 = vector.broadcast %28 : vector<1x128xf32> to vector<8x128xf32>
    %32 = arith.addf %30, %31 : vector<8x128xf32>
    %33 = math.tanh %32 : vector<8x128xf32>
    %34 = arith.truncf %33 : vector<8x128xf32> to vector<8x128xbf16>
    %c0_15 = arith.constant 0 : index
    %c0_16 = arith.constant 0 : index
    %35 = vector.load %arg4[%c0_15, %c0_16] : memref<128x128xbf16, #tpu.memory_space<vmem>>, vector<128x128xbf16>
    %cst_17 = arith.constant dense<0.000000e+00> : vector<8x128xf32>
    %36 = tpu.matmul %34, %35, %cst_17 {dimension_numbers = #tpu.dot_dimension_numbers<[1], [0], [0], [1], [0, 0, 1, 1], [], []>} : vector<8x128xbf16>, vector<128x128xbf16>, vector<8x128xf32> -> vector<8x128xf32>
    %c0_18 = arith.constant 0 : index
    %c0_19 = arith.constant 0 : index
    %37 = vector.load %arg5[%c0_18, %c0_19] : memref<1x128xf32, #tpu.memory_space<vmem>>, vector<1x128xf32>
    %38 = vector.broadcast %37 : vector<1x128xf32> to vector<8x128xf32>
    %39 = arith.addf %36, %38 : vector<8x128xf32>
    %c0_20 = arith.constant 0 : index
    %c0_21 = arith.constant 0 : index
    %40 = vector.load %arg6[%c0_20, %c0_21] : memref<8x128xf32, #tpu.memory_space<vmem>>, vector<8x128xf32>
    tpu.vector_store %arg6[%c0_20, %c0_21], %39 {strides = array<i32>} : memref<8x128xf32, #tpu.memory_space<vmem>>, vector<8x128xf32>,
    return
  }
}

</mosaic_0001>

<llo_original>
// kernel: tpu_custom_call.1
$region0: #{tpu_custom_call.1}
  #allocation0 [shape = 'u32[]', space=smem, size = 0x4, offset = 0x4, fixed_abs, tag = 'smem constant byte address 0x4 - core index']
  #allocation1 [shape = 'u32[144,128]{1,0:T(1,128)}', space=vmem, size = 0x12000, scoped, tag = 'internal scratch']
  %s0 = inlined_call_operand.hbm [shape: f32[8,32], index: 0, kind: input, shape index: {}]
  %s1 = inlined_call_operand.hbm [shape: bf16[32,128], index: 1, kind: input, shape index: {}]
  %s2 = inlined_call_operand.vmem [shape: f32[1,128], index: 2, kind: input, shape index: {}]
  %s3 = inlined_call_operand.vmem [shape: f32[1,128], index: 3, kind: input, shape index: {}]
  %s4 = inlined_call_operand.hbm [shape: bf16[128,128], index: 4, kind: input, shape index: {}]
  %s5 = inlined_call_operand.vmem [shape: f32[1,128], index: 5, kind: input, shape index: {}]
  %s6 = inlined_call_operand.hbm [shape: f32[8,128], index: 6, kind: output, shape index: {}]
  %s7 = sld [smem:[#allocation0]]
  $region46: #{tpu_custom_call.1} parent=0
    _
  %s9 = ssub.s32 1, %s7
  %s10 = scalar_select 0, %s9, %s7
  $region1: #{tpu_custom_call.1} parent=0
    #allocation2 [shape = 'u8[4096]{0}', space=vmem, size = 0x1000, scoped, tag = 'input window, operand 0, single buffered']
    #allocation3 [shape = 's32[1]{0}', space=sflag, size = 0x4, scoped, tag = 'scoped memory for tpu_custom_call.1']
    #allocation4 [shape = 's32[1]{0}', space=sflag, size = 0x4, scoped, tag = 'scoped memory for tpu_custom_call.1']
    #allocation5 [shape = 'u8[8192]{0}', space=vmem, size = 0x2000, scoped, tag = 'input window, operand 1, single buffered']
    #allocation6 [shape = 's32[1]{0}', space=sflag, size = 0x4, scoped, tag = 'scoped memory for tpu_custom_call.1']
    #allocation7 [shape = 'u8[32768]{0}', space=vmem, size = 0x8000, scoped, tag = 'input window, operand 4, single buffered']
    #allocation8 [shape = 'u8[4096]{0}', space=vmem, size = 0x1000, scoped, tag = 'output window, operand 0, single buffered']
    %11 = vsyncpa [#allocation3], 0
    %12 = vsyncpa [#allocation6], 0
    %13 = vsyncpa [#allocation4], 0
    // Predicated region
    $region2: #{tpu_custom_call.1} parent=1 // pred_check
      _
    $region3: #{tpu_custom_call.1} parent=1 // pred_check_branch
      %15 = sbr.rel (0) target = $region5
    $region4: #{tpu_custom_call.1} parent=1 // pred_region
      %s17 = ssub.s32 128, 128
      %18 = vsyncadd [#allocation3], %s17
      %s20 = sshll.u32 [#allocation2], 4
      %s21 = int_to_ptr.vmem [resolvable:$true] %s20
      %23 = dma.hbm_to_vmem [thread:$0]  %s0, 128, %s21, [#allocation3]
    $region5: #{tpu_custom_call.1} parent=1 // pred_fallthru
      _
    // Predicated region
    $region6: #{tpu_custom_call.1} parent=1 // pred_check
      _
    $region7: #{tpu_custom_call.1} parent=1 // pred_check_branch
      %25 = sbr.rel (0) target = $region9
    $region8: #{tpu_custom_call.1} parent=1 // pred_region
      %s27 = ssub.s32 256, 256
      %28 = vsyncadd [#allocation6], %s27
      %s29 = sshll.u32 [#allocation5], 4
      %s30 = int_to_ptr.vmem [resolvable:$true] %s29
      %35 = dma.hbm_to_vmem [thread:$0]  %s1, 256, %s30, [#allocation6], 64, 64, 4
    $region9: #{tpu_custom_call.1} parent=1 // pred_fallthru
      _
    // Predicated region
    $region10: #{tpu_custom_call.1} parent=1 // pred_check
      _
    $region11: #{tpu_custom_call.1} parent=1 // pred_check_branch
      %37 = sbr.rel (0) target = $region13
    $region12: #{tpu_custom_call.1} parent=1 // pred_region
      _
    $region13: #{tpu_custom_call.1} parent=1 // pred_fallthru
      _
    // Predicated region
    $region14: #{tpu_custom_call.1} parent=1 // pred_check
      _
    $region15: #{tpu_custom_call.1} parent=1 // pred_check_branch
      %39 = sbr.rel (0) target = $region17
    $region16: #{tpu_custom_call.1} parent=1 // pred_region
      _
    $region17: #{tpu_custom_call.1} parent=1 // pred_fallthru
      _
    // Predicated region
    $region18: #{tpu_custom_call.1} parent=1 // pred_check
      _
    $region19: #{tpu_custom_call.1} parent=1 // pred_check_branch
      %41 = sbr.rel (0) target = $region21
    $region20: #{tpu_custom_call.1} parent=1 // pred_region
      %s43 = ssub.s32 1024, 1024
      %44 = vsyncadd [#allocation6], %s43
      %s45 = sshll.u32 [#allocation7], 4
      %s46 = int_to_ptr.vmem [resolvable:$true] %s45
      %51 = dma.hbm_to_vmem [thread:$0]  %s4, 1024, %s46, [#allocation6], 64, 64, 4
    $region21: #{tpu_custom_call.1} parent=1 // pred_fallthru
      _
    // Predicated region
    $region22: #{tpu_custom_call.1} parent=1 // pred_check
      _
    $region23: #{tpu_custom_call.1} parent=1 // pred_check_branch
      %53 = sbr.rel (0) target = $region25
    $region24: #{tpu_custom_call.1} parent=1 // pred_region
      _
    $region25: #{tpu_custom_call.1} parent=1 // pred_fallthru
      _
    // Predicated region
    $region26: #{tpu_custom_call.1} parent=1 // pred_check
      _
    $region27: #{tpu_custom_call.1} parent=1 // pred_check_branch
      %55 = sbr.rel (0) target = $region29
    $region28: #{tpu_custom_call.1} parent=1 // pred_region
      %56 = dma.done [#allocation3], 128
    $region29: #{tpu_custom_call.1} parent=1 // pred_fallthru
      _
    // Predicated region
    $region30: #{tpu_custom_call.1} parent=1 // pred_check
      _
    $region31: #{tpu_custom_call.1} parent=1 // pred_check_branch
      %58 = sbr.rel (0) target = $region33
    $region32: #{tpu_custom_call.1} parent=1 // pred_region
      %59 = dma.done [#allocation6], 256
    $region33: #{tpu_custom_call.1} parent=1 // pred_fallthru
      _
    // Predicated region
    $region34: #{tpu_custom_call.1} parent=1 // pred_check
      _
    $region35: #{tpu_custom_call.1} parent=1 // pred_check_branch
      %61 = sbr.rel (0) target = $region37
    $region36: #{tpu_custom_call.1} parent=1 // pred_region
      %62 = dma.done [#allocation6], 1024
    $region37: #{tpu_custom_call.1} parent=1 // pred_fallthru
      _
    %v64 = vld [vmem:[#allocation2] sm:$0xff]
    %v65 = vpack.c.bf16 %v64, %v64
    %v66 = vld [vmem:[#allocation5] sm:$0xf]
    %v67 = vld [vmem:[#allocation5 + $0x4] sm:$0xf]
    %v68 = vld [vmem:[#allocation5 + $0x8] sm:$0xf]
    %v69 = vld [vmem:[#allocation5 + $0xc] sm:$0xf]
    %v74 = vunpack.c.l.b16 %v66
    %v75 = vunpack.c.l.b16 %v67
    %v76 = vunpack.c.l.b16 %v68
    %v77 = vunpack.c.l.b16 %v69
    %v78 = vpack.c.b16 %v75, %v74
    %v79 = vpack.c.b16 %v77, %v76
    %vm82 = vcmask 261120
    %v84 = vsel %vm82, %v65, 0
    %86 = vmatprep.subr.bf16.mxu0 0
    %87 = vmatpush1.bf16.msra.mxu0 %v78
    %88 = vmatprep.subr.bf16.mxu0 0
    %89 = vmatpush1.bf16.msra.mxu0 %v79
    %90 = vmatprep.subr.bf16.mxu0 0
    %91 = vmatpush1.bf16.msra.mxu0 0
    %92 = vmatprep.subr.bf16.mxu0 0
    %93 = vmatpush1.bf16.msra.mxu0 0
    %94 = vmatprep.subr.bf16.mxu0 0
    %95 = vmatpush1.bf16.msra.mxu0 0
    %96 = vmatprep.subr.bf16.mxu0 0
    %97 = vmatpush1.bf16.msra.mxu0 0
    %98 = vmatprep.subr.bf16.mxu0 0
    %99 = vmatpush1.bf16.msra.mxu0 0
    %100 = vmatprep.subr.bf16.mxu0 0
    %101 = vmatpush1.bf16.msra.mxu0 0
    %102 = vmatprep.subr.bf16.mxu0 0
    %103 = vmatpush1.bf16.msra.mxu0 0
    %104 = vmatprep.subr.bf16.mxu0 0
    %105 = vmatpush1.bf16.msra.mxu0 0
    %106 = vmatprep.subr.bf16.mxu0 0
    %107 = vmatpush1.bf16.msra.mxu0 0
    %108 = vmatprep.subr.bf16.mxu0 0
    %109 = vmatpush1.bf16.msra.mxu0 0
    %110 = vmatprep.subr.bf16.mxu0 0
    %111 = vmatpush1.bf16.msra.mxu0 0
    %112 = vmatprep.subr.bf16.mxu0 0
    %113 = vmatpush1.bf16.msra.mxu0 0
    %114 = vmatprep.subr.bf16.mxu0 0
    %115 = vmatpush1.bf16.msra.mxu0 0
    %116 = vmatprep.subr.bf16.mxu0 0
    %117 = vmatpush1.bf16.msra.mxu0 0
    %118 = vmatprep.mubr.bf16.mxu0 0
    %119 = vmatmul.mubr.bf16.gmra.mrb[0].mxu0 %v84
    %v120 = vpop.f32.mrb[0].mxu0
    %v121 = vadd.f32 0.0, %v120
    %v122 = vpop.f32.mrb[0].mxu0
    %v123 = vpop.f32.mrb[0].mxu0
    %v124 = vpop.f32.mrb[0].mxu0
    %125 = vdwg.mxu0
    %v126 = vrot.slane %v121, 4
    %v127 = vadd.f32 %v121, %v126
    %v128 = vrot.slane %v127, 2
    %v129 = vadd.f32 %v127, %v128
    %v130 = vrot.slane %v129, 1
    %v131 = vadd.f32 %v129, %v130
    %v132 = vmul.f32 %v121, %v121
    %v133 = vrot.slane %v132, 4
    %v134 = vadd.f32 %v132, %v133
    %v135 = vrot.slane %v134, 2
    %v136 = vadd.f32 %v134, %v135
    %v137 = vrot.slane %v136, 1
    %v138 = vadd.f32 %v136, %v137
    %v139 = vmul.f32 %v131, 0.125
    %v140 = vmul.f32 %v138, 0.125
    %v141 = vmul.f32 %v139, %v139
    %v142 = vsub.f32 %v140, %v141
    %v143 = vmax.f32 %v142, 0.0
    %v144 = vadd.f32 %v143, 1e-05
    %v145 = vrsqrt.pop %v144
    %v146 = vld [vmem:[%s2] sm:$0x1]
    %v147 = vmul.f32 %v145, %v146
    %v148 = vmul.f32 %v147, 0.5
    %v149 = vld [vmem:[%s3] sm:$0x1]
    %v150 = vmul.f32 %v139, %v147
    %v151 = vsub.f32 %v149, %v150
    %v152 = vmul.f32 %v151, 0.5
    %v153 = vlaneseq
    %v154 = vshrl.u32 %v153, 7
    %v155 = vsub.s32 0, %v154
    %v156 = vrot.slane %v148, %v155
    %v157 = vmul.f32 %v121, %v156
    %v159 = vlaneseq
    %v160 = vshrl.u32 %v159, 7
    %v161 = vsub.s32 0, %v160
    %v162 = vrot.slane %v152, %v161
    %v164 = vadd.f32 %v157, %v162
    %v165 = vtanh.pop %v164
    %v166 = vpack.c.bf16 %v165, %v165
    %v167 = vld [vmem:[#allocation7] sm:$0xf]
    %v168 = vld [vmem:[#allocation7 + $0x4] sm:$0xf]
    %v169 = vld [vmem:[#allocation7 + $0x8] sm:$0xf]
    %v170 = vld [vmem:[#allocation7 + $0xc] sm:$0xf]
    %v171 = vld [vmem:[#allocation7 + $0x10] sm:$0xf]
    %v172 = vld [vmem:[#allocation7 + $0x14] sm:$0xf]
    %v173 = vld [vmem:[#allocation7 + $0x18] sm:$0xf]
    %v174 = vld [vmem:[#allocation7 + $0x1c] sm:$0xf]
    %v175 = vld [vmem:[#allocation7 + $0x20] sm:$0xf]
    %v176 = vld [vmem:[#allocation7 + $0x24] sm:$0xf]
    %v177 = vld [vmem:[#allocation7 + $0x28] sm:$0xf]
    %v178 = vld [vmem:[#allocation7 + $0x2c] sm:$0xf]
    %v179 = vld [vmem:[#allocation7 + $0x30] sm:$0xf]
    %v180 = vld [vmem:[#allocation7 + $0x34] sm:$0xf]
    %v181 = vld [vmem:[#allocation7 + $0x38] sm:$0xf]
    %v182 = vld [vmem:[#allocation7 + $0x3c] sm:$0xf]
    %v183 = vld [vmem:[%s5] sm:$0x1]
    %v185 = vlaneseq
    %v186 = vshrl.u32 %v185, 7
    %v187 = vsub.s32 0, %v186
    %v188 = vrot.slane %v183, %v187
    %v206 = vunpack.c.l.b16 %v167
    %v207 = vunpack.c.l.b16 %v168
    %v208 = vunpack.c.l.b16 %v169
    %v209 = vunpack.c.l.b16 %v170
    %v210 = vunpack.c.l.b16 %v171
    %v211 = vunpack.c.l.b16 %v172
    %v212 = vunpack.c.l.b16 %v173
    %v213 = vunpack.c.l.b16 %v174
    %v214 = vunpack.c.l.b16 %v175
    %v215 = vunpack.c.l.b16 %v176
    %v216 = vunpack.c.l.b16 %v177
    %v217 = vunpack.c.l.b16 %v178
    %v218 = vunpack.c.l.b16 %v179
    %v219 = vunpack.c.l.b16 %v180
    %v220 = vunpack.c.l.b16 %v181
    %v221 = vunpack.c.l.b16 %v182
    %v222 = vpack.c.b16 %v207, %v206
    %v223 = vpack.c.b16 %v209, %v208
    %v224 = vpack.c.b16 %v211, %v210
    %v225 = vpack.c.b16 %v213, %v212
    %v226 = vpack.c.b16 %v215, %v214
    %v227 = vpack.c.b16 %v217, %v216
    %v228 = vpack.c.b16 %v219, %v218
    %v229 = vpack.c.b16 %v221, %v220
    %238 = vmatprep.subr.bf16.mxu0 0
    %239 = vmatpush1.bf16.msra.mxu0 %v222
    %240 = vmatprep.subr.bf16.mxu0 0
    %241 = vmatpush1.bf16.msra.mxu0 %v223
    %242 = vmatprep.subr.bf16.mxu0 0
    %243 = vmatpush1.bf16.msra.mxu0 %v224
    %244 = vmatprep.subr.bf16.mxu0 0
    %245 = vmatpush1.bf16.msra.mxu0 %v225
    %246 = vmatprep.subr.bf16.mxu0 0
    %247 = vmatpush1.bf16.msra.mxu0 %v226
    %248 = vmatprep.subr.bf16.mxu0 0
    %249 = vmatpush1.bf16.msra.mxu0 %v227
    %250 = vmatprep.subr.bf16.mxu0 0
    %251 = vmatpush1.bf16.msra.mxu0 %v228
    %252 = vmatprep.subr.bf16.mxu0 0
    %253 = vmatpush1.bf16.msra.mxu0 %v229
    %254 = vmatprep.subr.bf16.mxu0 0
    %255 = vmatpush1.bf16.msra.mxu0 0
    %256 = vmatprep.subr.bf16.mxu0 0
    %257 = vmatpush1.bf16.msra.mxu0 0
    %258 = vmatprep.subr.bf16.mxu0 0
    %259 = vmatpush1.bf16.msra.mxu0 0
    %260 = vmatprep.subr.bf16.mxu0 0
    %261 = vmatpush1.bf16.msra.mxu0 0
    %262 = vmatprep.subr.bf16.mxu0 0
    %263 = vmatpush1.bf16.msra.mxu0 0
    %264 = vmatprep.subr.bf16.mxu0 0
    %265 = vmatpush1.bf16.msra.mxu0 0
    %266 = vmatprep.subr.bf16.mxu0 0
    %267 = vmatpush1.bf16.msra.mxu0 0
    %268 = vmatprep.subr.bf16.mxu0 0
    %269 = vmatpush1.bf16.msra.mxu0 0
    %270 = vmatprep.mubr.bf16.mxu0 0
    %271 = vmatmul.mubr.bf16.gmra.mrb[0].mxu0 %v166
    %v272 = vpop.f32.mrb[0].mxu0
    %v273 = vadd.f32 %v188, %v272
    %v274 = vpop.f32.mrb[0].mxu0
    %v275 = vpop.f32.mrb[0].mxu0
    %v276 = vpop.f32.mrb[0].mxu0
    %277 = vdwg.mxu0
    %278 = vst [vmem:[#allocation8] sm:$0xff] %v273
    // Predicated region
    $region38: #{tpu_custom_call.1} parent=1 // pred_check
      _
    $region39: #{tpu_custom_call.1} parent=1 // pred_check_branch
      %280 = sbr.rel (0) target = $region41
    $region40: #{tpu_custom_call.1} parent=1 // pred_region
      %s282 = ssub.s32 128, 128
      %283 = vsyncadd [#allocation4], %s282
      %s285 = sshll.u32 [#allocation8], 4
      %s286 = int_to_ptr.vmem [resolvable:$true] %s285
      %288 = dma.vmem_to_hbm [thread:$0]  %s286, 128, %s6, [#allocation4]
    $region41: #{tpu_custom_call.1} parent=1 // pred_fallthru
      _
    // Predicated region
    $region42: #{tpu_custom_call.1} parent=1 // pred_check
      _
    $region43: #{tpu_custom_call.1} parent=1 // pred_check_branch
      %290 = sbr.rel (0) target = $region45
    $region44: #{tpu_custom_call.1} parent=1 // pred_region
      %291 = dma.done [#allocation4], 128
    $region45: #{tpu_custom_call.1} parent=1 // pred_fallthru
      _
    %292 = vsyncpa [#allocation3], 1
    %293 = vsyncpa [#allocation6], 1
    %294 = vsyncpa [#allocation4], 1

</llo_original>
